<compile_context>
chip_gen: v5e
topology: v5e:2x2
jax: 0.10.0
libtpu: 0.0.40
codegen_flags: <defaults>
</compile_context>

<pallas_src>
import functools

import jax
import jax.numpy as jnp
from jax.experimental import pallas as pl
from jax.experimental.pallas import tpu as pltpu


def _attention_kernel(x_ref, wqkv_ref, wout_ref, g_ref, o_ref, *,
                      heads, dim_head, eps, compute_dtype, approx_recip):
    # x_ref    : (1, N, dim)            one batch element
    # wqkv_ref : (dim, 3*inner)         fused QKV weight (Q columns pre-scaled)
    # wout_ref : (heads, dim_head, dim) per-head output-projection weight
    # g_ref    : (1, dim)               LayerNorm gain (f32)
    # o_ref    : (1, N, dim)            output block
    n = x_ref.shape[1]
    dim = x_ref.shape[2]
    inner = heads * dim_head

    x = x_ref[0].astype(compute_dtype)                   # (N, dim) MXU operand

    # One fused, lane-dense QKV projection (f32 accumulation on the MXU).
    qkv = jnp.dot(x, wqkv_ref[...],
                  preferred_element_type=jnp.float32)    # (N, 3*inner) f32

    wout = wout_ref[...]                                 # (H, dh, dim)
    proj = jnp.zeros((n, dim), dtype=jnp.float32)        # output-proj accumulator

    # Static per-head unroll (H is small); Q/K/V are static lane slices of the
    # fused projection output -- no broadcasted x copies, no transposes.
    for h in range(heads):
        lo = h * dim_head
        hi = lo + dim_head
        q = qkv[:, lo:hi].astype(compute_dtype)                      # (N, dh)
        k = qkv[:, inner + lo:inner + hi].astype(compute_dtype)      # (N, dh)
        v = qkv[:, 2 * inner + lo:2 * inner + hi].astype(compute_dtype)

        # Attention logits + softmax in f32 (torch: softmax(dtype=float32)).
        sim = jnp.einsum('qd,kd->qk', q, k,
                         preferred_element_type=jnp.float32)         # (N, N)
        sim = sim - jnp.max(sim, axis=-1, keepdims=True)
        p = jnp.exp(sim)
        l = jnp.sum(p, axis=-1, keepdims=True)
        if approx_recip:
            attn = p * pl.reciprocal(l, approx=True)   # EUP slot, ~free
        else:
            attn = p / l                               # exact parity path
        attn = attn.astype(compute_dtype)              # torch: attn.type(sim.dtype)

        out_h = jnp.einsum('qk,kd->qd', attn, v,
                           preferred_element_type=jnp.float32)       # (N, dh)

        # Head sum folded straight into the output projection (no concat).
        proj = proj + jnp.dot(out_h.astype(compute_dtype), wout[h],
                              preferred_element_type=jnp.float32)    # (N, dim)

    # Gain-only LayerNorm (torch: unbiased=False variance), f32 math.
    mean = jnp.mean(proj, axis=-1, keepdims=True)
    var = jnp.mean((proj - mean) ** 2, axis=-1, keepdims=True)
    y = (proj - mean) * jax.lax.rsqrt(var + eps) * g_ref[...]

    o_ref[0] = y.astype(o_ref.dtype)


def attention_forward(x, w_qkv, w_out, g, *, heads, dim_head,
                      compute_dtype=jnp.bfloat16):
    """x: (B, N, dim). w_qkv: (3*inner, dim), w_out: (dim, inner), g: (dim,)."""
    b, n, dim = x.shape
    inner = heads * dim_head
    scale = dim_head ** (-0.5)
    # Torch LayerNorm rule from the source module: 1e-5 for f32, 1e-3 otherwise.
    eps = 1e-5 if x.dtype == jnp.float32 else 1e-3

    # One-time wrapper-side weight re-layout:
    #   * softmax scale folded into the Q weight columns,
    #   * Q/K/V fused into a single (dim, 3*inner) MXU operand,
    #   * output weight split per head as (heads, dim_head, dim),
    #   * matmul operands pre-cast to compute_dtype (bf16 perf / f32 parity).
    wq, wk, wv = jnp.split(w_qkv, 3, axis=0)                      # (inner, dim) each
    wqkv_fused = jnp.concatenate([wq * scale, wk, wv], axis=0).T  # (dim, 3*inner)
    wqkv_fused = wqkv_fused.astype(compute_dtype)
    wout_h = w_out.T.reshape(heads, dim_head, dim).astype(compute_dtype)
    g2d = g.reshape(1, dim).astype(jnp.float32)

    kernel = functools.partial(
        _attention_kernel, heads=heads, dim_head=dim_head, eps=eps,
        compute_dtype=compute_dtype,
        approx_recip=(compute_dtype != jnp.float32))

    # Weights use constant index_maps, so they stay VMEM-resident across grid
    # steps (no per-batch re-DMA).
    return pl.pallas_call(
        kernel,
        out_shape=jax.ShapeDtypeStruct((b, n, dim), x.dtype),
        grid_spec=pltpu.PrefetchScalarGridSpec(
            num_scalar_prefetch=0,
            grid=(b,),
            in_specs=[
                pl.BlockSpec((1, n, dim), lambda i: (i, 0, 0)),
                pl.BlockSpec((dim, 3 * inner), lambda i: (0, 0)),
                pl.BlockSpec((heads, dim_head, dim), lambda i: (0, 0, 0)),
                pl.BlockSpec((1, dim), lambda i: (0, 0)),
            ],
            out_specs=pl.BlockSpec((1, n, dim), lambda i: (i, 0, 0)),
        ),
        compiler_params=pltpu.CompilerParams(
            dimension_semantics=("parallel",)),   # feeds v7x's 2nd TensorCore
    )(x, wqkv_fused, wout_h, g2d)


def attention_reference(x, w_qkv, w_out, g, *, heads, dim_head):
    """Pure-JAX (f32) reference matching the PyTorch forward semantics."""
    b, n, dim = x.shape
    inner = heads * dim_head
    scale = dim_head ** (-0.5)
    qkv = jnp.einsum('bnd,od->bno', x, w_qkv)
    q, k, v = jnp.split(qkv, 3, axis=-1)

    def to_heads(t):
        return t.reshape(b, n, heads, dim_head).transpose(0, 2, 1, 3)

    q, k, v = map(to_heads, (q, k, v))
    q = q * scale
    sim = jnp.einsum('bhid,bhjd->bhij', q, k)
    attn = jax.nn.softmax(sim.astype(jnp.float32), axis=-1).astype(sim.dtype)
    out = jnp.einsum('bhij,bhjd->bhid', attn, v)
    out = out.transpose(0, 2, 1, 3).reshape(b, n, inner)
    proj = jnp.einsum('bni,di->bnd', out, w_out)
    eps = 1e-5 if x.dtype == jnp.float32 else 1e-3
    mean = jnp.mean(proj, axis=-1, keepdims=True)
    var = jnp.mean((proj - mean) ** 2, axis=-1, keepdims=True)
    return (proj - mean) * jax.lax.rsqrt(var + eps) * g


if __name__ == "__main__":
    # Small, forward-consistent shapes.
    B, N, DIM = 2, 8, 32
    HEADS, DIM_HEAD = 4, 16
    INNER = HEADS * DIM_HEAD

    key = jax.random.PRNGKey(0)
    kx, kq, ko, _ = jax.random.split(key, 4)

    x = jax.random.normal(kx, (B, N, DIM), dtype=jnp.float32)
    # Deterministic parameter init (torch Linear layout: (out, in)).
    w_qkv = jax.random.normal(kq, (3 * INNER, DIM), dtype=jnp.float32) * 0.05
    w_out = jax.random.normal(ko, (DIM, INNER), dtype=jnp.float32) * 0.05
    g = jnp.ones((DIM,), dtype=jnp.float32)   # LayerNorm gain init = ones

    ref = attention_reference(x, w_qkv, w_out, g, heads=HEADS, dim_head=DIM_HEAD)

    # Performance path: bf16 MXU operands, f32 accumulation/softmax/LayerNorm,
    # EUP approx reciprocal.  Tolerance covers the bf16 operand rounding.
    out = attention_forward(x, w_qkv, w_out, g, heads=HEADS, dim_head=DIM_HEAD)
    out = jax.block_until_ready(out)
    assert out.shape == (B, N, DIM)
    assert jnp.allclose(out, ref, rtol=5e-2, atol=5e-2), "bf16 path mismatch"

    # Parity path: f32 MXU operands + exact softmax reciprocal.
    out_f32 = attention_forward(x, w_qkv, w_out, g, heads=HEADS,
                                dim_head=DIM_HEAD, compute_dtype=jnp.float32)
    out_f32 = jax.block_until_ready(out_f32)
    assert jnp.allclose(out_f32, ref, rtol=1e-4, atol=1e-4), "f32 path mismatch"

    print("KERNEL_OK")
</pallas_src>

<mosaic_0001>
module attributes {stable_mosaic.version = 11 : i64} {
  func.func @_attention_kernel(%arg0: i32, %arg1: memref<1x8x32xf32, #tpu.memory_space<vmem>>, %arg2: memref<32x192xbf16, #tpu.memory_space<vmem>>, %arg3: memref<4x16x32xbf16, #tpu.memory_space<vmem>>, %arg4: memref<1x32xf32, #tpu.memory_space<vmem>>, %arg5: memref<1x8x32xf32, #tpu.memory_space<vmem>>) attributes {dimension_semantics = [#tpu.dimension_semantics<parallel>], iteration_bounds = array<i64: 2>, scalar_prefetch = 0 : i64, scratch_operands = 0 : i64, tpu.core_type = #tpu.core_type<tc>, window_params = [{transform_indices = @transform_0, window_bounds = array<i64: 1, 8, 32>}, {pipeline_mode = #tpu.pipeline_mode<synchronous>, transform_indices = @transform_1, window_bounds = array<i64: 32, 192>}, {pipeline_mode = #tpu.pipeline_mode<synchronous>, transform_indices = @transform_2, window_bounds = array<i64: 4, 16, 32>}, {pipeline_mode = #tpu.pipeline_mode<synchronous>, transform_indices = @transform_3, window_bounds = array<i64: 1, 32>}, {transform_indices = @transform_4, window_bounds = array<i64: 1, 8, 32>}]} {
    %c0 = arith.constant 0 : index
    %c0_0 = arith.constant 0 : index
    %c0_1 = arith.constant 0 : index
    %0 = vector.load %arg1[%c0, %c0_0, %c0_1] : memref<1x8x32xf32, #tpu.memory_space<vmem>>, vector<1x8x32xf32>
    %1 = vector.shape_cast %0 : vector<1x8x32xf32> to vector<8x32xf32>
    %2 = arith.truncf %1 : vector<8x32xf32> to vector<8x32xbf16>
    %c0_2 = arith.constant 0 : index
    %c0_3 = arith.constant 0 : index
    %3 = vector.load %arg2[%c0_2, %c0_3] : memref<32x192xbf16, #tpu.memory_space<vmem>>, vector<32x192xbf16>
    %cst = arith.constant dense<0.000000e+00> : vector<8x192xf32>
    %4 = tpu.matmul %2, %3, %cst {dimension_numbers = #tpu.dot_dimension_numbers<[1], [0], [0], [1], [0, 0, 1, 1], [], []>} : vector<8x32xbf16>, vector<32x192xbf16>, vector<8x192xf32> -> vector<8x192xf32>
    %c0_4 = arith.constant 0 : index
    %c0_5 = arith.constant 0 : index
    %c0_6 = arith.constant 0 : index
    %5 = vector.load %arg3[%c0_4, %c0_5, %c0_6] : memref<4x16x32xbf16, #tpu.memory_space<vmem>>, vector<4x16x32xbf16>
    %cst_7 = arith.constant 0.000000e+00 : f32
    %6 = vector.broadcast %cst_7 : f32 to vector<8x32xf32>
    %7 = vector.extract_strided_slice %4 {offsets = [0, 0], sizes = [8, 16], strides = [1, 1]} : vector<8x192xf32> to vector<8x16xf32>
    %8 = arith.truncf %7 : vector<8x16xf32> to vector<8x16xbf16>
    %9 = vector.extract_strided_slice %4 {offsets = [0, 64], sizes = [8, 16], strides = [1, 1]} : vector<8x192xf32> to vector<8x16xf32>
    %10 = arith.truncf %9 : vector<8x16xf32> to vector<8x16xbf16>
    %11 = vector.extract_strided_slice %4 {offsets = [0, 128], sizes = [8, 16], strides = [1, 1]} : vector<8x192xf32> to vector<8x16xf32>
    %12 = arith.truncf %11 : vector<8x16xf32> to vector<8x16xbf16>
    "tpu.trace_start"() <{level = 10 : i32, message = "qd,kd->qk"}> : () -> ()
    %cst_8 = arith.constant dense<0.000000e+00> : vector<8x8xf32>
    %13 = tpu.matmul %8, %10, %cst_8 {dimension_numbers = #tpu.dot_dimension_numbers<[1], [1], [0], [0], [0, 0, 1, 0], [], []>} : vector<8x16xbf16>, vector<8x16xbf16>, vector<8x8xf32> -> vector<8x8xf32>
    "tpu.trace_stop"() : () -> ()
    %cst_9 = arith.constant dense<0xFF800000> : vector<8xf32>
    %14 = vector.multi_reduction <maximumf>, %13, %cst_9 [1] : vector<8x8xf32> to vector<8xf32>
    %15 = vector.shape_cast %14 : vector<8xf32> to vector<8x1xf32>
    %16 = vector.broadcast %15 : vector<8x1xf32> to vector<8x8xf32>
    %17 = arith.subf %13, %16 : vector<8x8xf32>
    %18 = math.exp %17 : vector<8x8xf32>
    %cst_10 = arith.constant dense<0.000000e+00> : vector<8xf32>
    %19 = vector.multi_reduction <add>, %18, %cst_10 [1] : vector<8x8xf32> to vector<8xf32>
    %20 = vector.shape_cast %19 : vector<8xf32> to vector<8x1xf32>
    %21 = tpu.reciprocal %20 {approx = true} : vector<8x1xf32> -> vector<8x1xf32>
    %22 = vector.broadcast %21 : vector<8x1xf32> to vector<8x8xf32>
    %23 = arith.mulf %18, %22 : vector<8x8xf32>
    %24 = arith.truncf %23 : vector<8x8xf32> to vector<8x8xbf16>
    "tpu.trace_start"() <{level = 10 : i32, message = "qk,kd->qd"}> : () -> ()
    %cst_11 = arith.constant dense<0.000000e+00> : vector<8x16xf32>
    %25 = tpu.matmul %24, %12, %cst_11 {dimension_numbers = #tpu.dot_dimension_numbers<[1], [0], [0], [1], [0, 0, 1, 1], [], []>} : vector<8x8xbf16>, vector<8x16xbf16>, vector<8x16xf32> -> vector<8x16xf32>
    "tpu.trace_stop"() : () -> ()
    %26 = arith.truncf %25 : vector<8x16xf32> to vector<8x16xbf16>
    %27 = vector.extract_strided_slice %5 {offsets = [0, 0, 0], sizes = [1, 16, 32], strides = [1, 1, 1]} : vector<4x16x32xbf16> to vector<1x16x32xbf16>
    %28 = vector.shape_cast %27 : vector<1x16x32xbf16> to vector<16x32xbf16>
    %cst_12 = arith.constant dense<0.000000e+00> : vector<8x32xf32>
    %29 = tpu.matmul %26, %28, %cst_12 {dimension_numbers = #tpu.dot_dimension_numbers<[1], [0], [0], [1], [0, 0, 1, 1], [], []>} : vector<8x16xbf16>, vector<16x32xbf16>, vector<8x32xf32> -> vector<8x32xf32>
    %30 = arith.addf %6, %29 : vector<8x32xf32>
    %31 = vector.extract_strided_slice %4 {offsets = [0, 16], sizes = [8, 16], strides = [1, 1]} : vector<8x192xf32> to vector<8x16xf32>
    %32 = arith.truncf %31 : vector<8x16xf32> to vector<8x16xbf16>
    %33 = vector.extract_strided_slice %4 {offsets = [0, 80], sizes = [8, 16], strides = [1, 1]} : vector<8x192xf32> to vector<8x16xf32>
    %34 = arith.truncf %33 : vector<8x16xf32> to vector<8x16xbf16>
    %35 = vector.extract_strided_slice %4 {offsets = [0, 144], sizes = [8, 16], strides = [1, 1]} : vector<8x192xf32> to vector<8x16xf32>
    %36 = arith.truncf %35 : vector<8x16xf32> to vector<8x16xbf16>
    "tpu.trace_start"() <{level = 10 : i32, message = "qd,kd->qk"}> : () -> ()
    %cst_13 = arith.constant dense<0.000000e+00> : vector<8x8xf32>
    %37 = tpu.matmul %32, %34, %cst_13 {dimension_numbers = #tpu.dot_dimension_numbers<[1], [1], [0], [0], [0, 0, 1, 0], [], []>} : vector<8x16xbf16>, vector<8x16xbf16>, vector<8x8xf32> -> vector<8x8xf32>
    "tpu.trace_stop"() : () -> ()
    %cst_14 = arith.constant dense<0xFF800000> : vector<8xf32>
    %38 = vector.multi_reduction <maximumf>, %37, %cst_14 [1] : vector<8x8xf32> to vector<8xf32>
    %39 = vector.shape_cast %38 : vector<8xf32> to vector<8x1xf32>
    %40 = vector.broadcast %39 : vector<8x1xf32> to vector<8x8xf32>
    %41 = arith.subf %37, %40 : vector<8x8xf32>
    %42 = math.exp %41 : vector<8x8xf32>
    %cst_15 = arith.constant dense<0.000000e+00> : vector<8xf32>
    %43 = vector.multi_reduction <add>, %42, %cst_15 [1] : vector<8x8xf32> to vector<8xf32>
    %44 = vector.shape_cast %43 : vector<8xf32> to vector<8x1xf32>
    %45 = tpu.reciprocal %44 {approx = true} : vector<8x1xf32> -> vector<8x1xf32>
    %46 = vector.broadcast %45 : vector<8x1xf32> to vector<8x8xf32>
    %47 = arith.mulf %42, %46 : vector<8x8xf32>
    %48 = arith.truncf %47 : vector<8x8xf32> to vector<8x8xbf16>
    "tpu.trace_start"() <{level = 10 : i32, message = "qk,kd->qd"}> : () -> ()
    %cst_16 = arith.constant dense<0.000000e+00> : vector<8x16xf32>
    %49 = tpu.matmul %48, %36, %cst_16 {dimension_numbers = #tpu.dot_dimension_numbers<[1], [0], [0], [1], [0, 0, 1, 1], [], []>} : vector<8x8xbf16>, vector<8x16xbf16>, vector<8x16xf32> -> vector<8x16xf32>
    "tpu.trace_stop"() : () -> ()
    %50 = arith.truncf %49 : vector<8x16xf32> to vector<8x16xbf16>
    %51 = vector.extract_strided_slice %5 {offsets = [1, 0, 0], sizes = [1, 16, 32], strides = [1, 1, 1]} : vector<4x16x32xbf16> to vector<1x16x32xbf16>
    %52 = vector.shape_cast %51 : vector<1x16x32xbf16> to vector<16x32xbf16>
    %cst_17 = arith.constant dense<0.000000e+00> : vector<8x32xf32>
    %53 = tpu.matmul %50, %52, %cst_17 {dimension_numbers = #tpu.dot_dimension_numbers<[1], [0], [0], [1], [0, 0, 1, 1], [], []>} : vector<8x16xbf16>, vector<16x32xbf16>, vector<8x32xf32> -> vector<8x32xf32>
    %54 = arith.addf %30, %53 : vector<8x32xf32>
    %55 = vector.extract_strided_slice %4 {offsets = [0, 32], sizes = [8, 16], strides = [1, 1]} : vector<8x192xf32> to vector<8x16xf32>
    %56 = arith.truncf %55 : vector<8x16xf32> to vector<8x16xbf16>
    %57 = vector.extract_strided_slice %4 {offsets = [0, 96], sizes = [8, 16], strides = [1, 1]} : vector<8x192xf32> to vector<8x16xf32>
    %58 = arith.truncf %57 : vector<8x16xf32> to vector<8x16xbf16>
    %59 = vector.extract_strided_slice %4 {offsets = [0, 160], sizes = [8, 16], strides = [1, 1]} : vector<8x192xf32> to vector<8x16xf32>
    %60 = arith.truncf %59 : vector<8x16xf32> to vector<8x16xbf16>
    "tpu.trace_start"() <{level = 10 : i32, message = "qd,kd->qk"}> : () -> ()
    %cst_18 = arith.constant dense<0.000000e+00> : vector<8x8xf32>
    %61 = tpu.matmul %56, %58, %cst_18 {dimension_numbers = #tpu.dot_dimension_numbers<[1], [1], [0], [0], [0, 0, 1, 0], [], []>} : vector<8x16xbf16>, vector<8x16xbf16>, vector<8x8xf32> -> vector<8x8xf32>
    "tpu.trace_stop"() : () -> ()
    %cst_19 = arith.constant dense<0xFF800000> : vector<8xf32>
    %62 = vector.multi_reduction <maximumf>, %61, %cst_19 [1] : vector<8x8xf32> to vector<8xf32>
    %63 = vector.shape_cast %62 : vector<8xf32> to vector<8x1xf32>
    %64 = vector.broadcast %63 : vector<8x1xf32> to vector<8x8xf32>
    %65 = arith.subf %61, %64 : vector<8x8xf32>
    %66 = math.exp %65 : vector<8x8xf32>
    %cst_20 = arith.constant dense<0.000000e+00> : vector<8xf32>
    %67 = vector.multi_reduction <add>, %66, %cst_20 [1] : vector<8x8xf32> to vector<8xf32>
    %68 = vector.shape_cast %67 : vector<8xf32> to vector<8x1xf32>
    %69 = tpu.reciprocal %68 {approx = true} : vector<8x1xf32> -> vector<8x1xf32>
    %70 = vector.broadcast %69 : vector<8x1xf32> to vector<8x8xf32>
    %71 = arith.mulf %66, %70 : vector<8x8xf32>
    %72 = arith.truncf %71 : vector<8x8xf32> to vector<8x8xbf16>
    "tpu.trace_start"() <{level = 10 : i32, message = "qk,kd->qd"}> : () -> ()
    %cst_21 = arith.constant dense<0.000000e+00> : vector<8x16xf32>
    %73 = tpu.matmul %72, %60, %cst_21 {dimension_numbers = #tpu.dot_dimension_numbers<[1], [0], [0], [1], [0, 0, 1, 1], [], []>} : vector<8x8xbf16>, vector<8x16xbf16>, vector<8x16xf32> -> vector<8x16xf32>
    "tpu.trace_stop"() : () -> ()
    %74 = arith.truncf %73 : vector<8x16xf32> to vector<8x16xbf16>
    %75 = vector.extract_strided_slice %5 {offsets = [2, 0, 0], sizes = [1, 16, 32], strides = [1, 1, 1]} : vector<4x16x32xbf16> to vector<1x16x32xbf16>
    %76 = vector.shape_cast %75 : vector<1x16x32xbf16> to vector<16x32xbf16>
    %cst_22 = arith.constant dense<0.000000e+00> : vector<8x32xf32>
    %77 = tpu.matmul %74, %76, %cst_22 {dimension_numbers = #tpu.dot_dimension_numbers<[1], [0], [0], [1], [0, 0, 1, 1], [], []>} : vector<8x16xbf16>, vector<16x32xbf16>, vector<8x32xf32> -> vector<8x32xf32>
    %78 = arith.addf %54, %77 : vector<8x32xf32>
    %79 = vector.extract_strided_slice %4 {offsets = [0, 48], sizes = [8, 16], strides = [1, 1]} : vector<8x192xf32> to vector<8x16xf32>
    %80 = arith.truncf %79 : vector<8x16xf32> to vector<8x16xbf16>
    %81 = vector.extract_strided_slice %4 {offsets = [0, 112], sizes = [8, 16], strides = [1, 1]} : vector<8x192xf32> to vector<8x16xf32>
    %82 = arith.truncf %81 : vector<8x16xf32> to vector<8x16xbf16>
    %83 = vector.extract_strided_slice %4 {offsets = [0, 176], sizes = [8, 16], strides = [1, 1]} : vector<8x192xf32> to vector<8x16xf32>
    %84 = arith.truncf %83 : vector<8x16xf32> to vector<8x16xbf16>
    "tpu.trace_start"() <{level = 10 : i32, message = "qd,kd->qk"}> : () -> ()
    %cst_23 = arith.constant dense<0.000000e+00> : vector<8x8xf32>
    %85 = tpu.matmul %80, %82, %cst_23 {dimension_numbers = #tpu.dot_dimension_numbers<[1], [1], [0], [0], [0, 0, 1, 0], [], []>} : vector<8x16xbf16>, vector<8x16xbf16>, vector<8x8xf32> -> vector<8x8xf32>
    "tpu.trace_stop"() : () -> ()
    %cst_24 = arith.constant dense<0xFF800000> : vector<8xf32>
    %86 = vector.multi_reduction <maximumf>, %85, %cst_24 [1] : vector<8x8xf32> to vector<8xf32>
    %87 = vector.shape_cast %86 : vector<8xf32> to vector<8x1xf32>
    %88 = vector.broadcast %87 : vector<8x1xf32> to vector<8x8xf32>
    %89 = arith.subf %85, %88 : vector<8x8xf32>
    %90 = math.exp %89 : vector<8x8xf32>
    %cst_25 = arith.constant dense<0.000000e+00> : vector<8xf32>
    %91 = vector.multi_reduction <add>, %90, %cst_25 [1] : vector<8x8xf32> to vector<8xf32>
    %92 = vector.shape_cast %91 : vector<8xf32> to vector<8x1xf32>
    %93 = tpu.reciprocal %92 {approx = true} : vector<8x1xf32> -> vector<8x1xf32>
    %94 = vector.broadcast %93 : vector<8x1xf32> to vector<8x8xf32>
    %95 = arith.mulf %90, %94 : vector<8x8xf32>
    %96 = arith.truncf %95 : vector<8x8xf32> to vector<8x8xbf16>
    "tpu.trace_start"() <{level = 10 : i32, message = "qk,kd->qd"}> : () -> ()
    %cst_26 = arith.constant dense<0.000000e+00> : vector<8x16xf32>
    %97 = tpu.matmul %96, %84, %cst_26 {dimension_numbers = #tpu.dot_dimension_numbers<[1], [0], [0], [1], [0, 0, 1, 1], [], []>} : vector<8x8xbf16>, vector<8x16xbf16>, vector<8x16xf32> -> vector<8x16xf32>
    "tpu.trace_stop"() : () -> ()
    %98 = arith.truncf %97 : vector<8x16xf32> to vector<8x16xbf16>
    %99 = vector.extract_strided_slice %5 {offsets = [3, 0, 0], sizes = [1, 16, 32], strides = [1, 1, 1]} : vector<4x16x32xbf16> to vector<1x16x32xbf16>
    %100 = vector.shape_cast %99 : vector<1x16x32xbf16> to vector<16x32xbf16>
    %cst_27 = arith.constant dense<0.000000e+00> : vector<8x32xf32>
    %101 = tpu.matmul %98, %100, %cst_27 {dimension_numbers = #tpu.dot_dimension_numbers<[1], [0], [0], [1], [0, 0, 1, 1], [], []>} : vector<8x16xbf16>, vector<16x32xbf16>, vector<8x32xf32> -> vector<8x32xf32>
    %102 = arith.addf %78, %101 : vector<8x32xf32>
    %cst_28 = arith.constant dense<0.000000e+00> : vector<8xf32>
    %103 = vector.multi_reduction <add>, %102, %cst_28 [1] : vector<8x32xf32> to vector<8xf32>
    %104 = vector.shape_cast %103 : vector<8xf32> to vector<8x1xf32>
    %cst_29 = arith.constant 3.200000e+01 : f32
    %105 = vector.broadcast %cst_29 : f32 to vector<8x1xf32>
    %106 = arith.divf %104, %105 : vector<8x1xf32>
    %107 = vector.broadcast %106 : vector<8x1xf32> to vector<8x32xf32>
    %108 = arith.subf %102, %107 : vector<8x32xf32>
    %109 = arith.mulf %108, %108 : vector<8x32xf32>
    %cst_30 = arith.constant dense<0.000000e+00> : vector<8xf32>
    %110 = vector.multi_reduction <add>, %109, %cst_30 [1] : vector<8x32xf32> to vector<8xf32>
    %111 = vector.shape_cast %110 : vector<8xf32> to vector<8x1xf32>
    %cst_31 = arith.constant 3.200000e+01 : f32
    %112 = vector.broadcast %cst_31 : f32 to vector<8x1xf32>
    %113 = arith.divf %111, %112 : vector<8x1xf32>
    %114 = vector.broadcast %106 : vector<8x1xf32> to vector<8x32xf32>
    %115 = arith.subf %102, %114 : vector<8x32xf32>
    %cst_32 = arith.constant 9.99999974E-6 : f32
    %116 = vector.broadcast %cst_32 : f32 to vector<8x1xf32>
    %117 = arith.addf %113, %116 : vector<8x1xf32>
    %118 = math.rsqrt %117 : vector<8x1xf32>
    %119 = vector.broadcast %118 : vector<8x1xf32> to vector<8x32xf32>
    %120 = arith.mulf %115, %119 : vector<8x32xf32>
    %c0_33 = arith.constant 0 : index
    %c0_34 = arith.constant 0 : index
    %121 = vector.load %arg4[%c0_33, %c0_34] : memref<1x32xf32, #tpu.memory_space<vmem>>, vector<1x32xf32>
    %122 = vector.broadcast %121 : vector<1x32xf32> to vector<8x32xf32>
    %123 = arith.mulf %120, %122 : vector<8x32xf32>
    %c0_35 = arith.constant 0 : index
    %c0_36 = arith.constant 0 : index
    %c0_37 = arith.constant 0 : index
    %124 = vector.load %arg5[%c0_35, %c0_36, %c0_37] : memref<1x8x32xf32, #tpu.memory_space<vmem>>, vector<1x8x32xf32>
    %125 = vector.shape_cast %124 : vector<1x8x32xf32> to vector<8x32xf32>
    %126 = vector.shape_cast %123 : vector<8x32xf32> to vector<1x8x32xf32>
    tpu.vector_store %arg5[%c0_35, %c0_36, %c0_37], %126 {strides = array<i32>} : memref<1x8x32xf32, #tpu.memory_space<vmem>>, vector<1x8x32xf32>,
    return
  }
  func.func @transform_0(%arg0: i32) -> (i32, i32, i32) {
    %c0_i32 = arith.constant 0 : i32
    %c0_i32_0 = arith.constant 0 : i32
    %c0_i32_1 = arith.constant 0 : i32
    return %arg0, %c0_i32, %c0_i32_0 : i32, i32, i32
  }
  func.func @transform_1(%arg0: i32) -> (i32, i32) {
    %c0_i32 = arith.constant 0 : i32
    %c0_i32_0 = arith.constant 0 : i32
    %c0_i32_1 = arith.constant 0 : i32
    return %c0_i32, %c0_i32_0 : i32, i32
  }
  func.func @transform_2(%arg0: i32) -> (i32, i32, i32) {
    %c0_i32 = arith.constant 0 : i32
    %c0_i32_0 = arith.constant 0 : i32
    %c0_i32_1 = arith.constant 0 : i32
    %c0_i32_2 = arith.constant 0 : i32
    return %c0_i32, %c0_i32_0, %c0_i32_1 : i32, i32, i32
  }
  func.func @transform_3(%arg0: i32) -> (i32, i32) {
    %c0_i32 = arith.constant 0 : i32
    %c0_i32_0 = arith.constant 0 : i32
    %c0_i32_1 = arith.constant 0 : i32
    return %c0_i32, %c0_i32_0 : i32, i32
  }
  func.func @transform_4(%arg0: i32) -> (i32, i32, i32) {
    %c0_i32 = arith.constant 0 : i32
    %c0_i32_0 = arith.constant 0 : i32
    %c0_i32_1 = arith.constant 0 : i32
    return %arg0, %c0_i32, %c0_i32_0 : i32, i32, i32
  }
}

</mosaic_0001>

<llo_original>
// kernel: tpu_custom_call.1
$region0: #{tpu_custom_call.1}
  #allocation0 [shape = 'u32[]', space=smem, size = 0x4, offset = 0x4, fixed_abs, tag = 'smem constant byte address 0x4 - core index']
  #allocation1 [shape = 'u32[72,128]{1,0:T(1,128)}', space=vmem, size = 0x9000, scoped, tag = 'internal scratch']
  %s0 = inlined_call_operand.hbm [shape: f32[2,8,32], index: 0, kind: input, shape index: {}]
  %s1 = inlined_call_operand.hbm [shape: bf16[32,192], index: 1, kind: input, shape index: {}]
  %s2 = inlined_call_operand.hbm [shape: bf16[4,16,32], index: 2, kind: input, shape index: {}]
  %s3 = inlined_call_operand.vmem [shape: f32[1,32], index: 3, kind: input, shape index: {}]
  %s4 = inlined_call_operand.hbm [shape: f32[2,8,32], index: 4, kind: output, shape index: {}]
  %s5 = sld [smem:[#allocation0]]
  $region61: #{tpu_custom_call.1} parent=0
    _
  %s7 = ssub.s32 1, %s5
  %s8 = scalar_select 0, %s7, %s5
  $region1: #{tpu_custom_call.1} parent=0
    #allocation2 [shape = 'u8[8192]{0}', space=vmem, size = 0x2000, scoped, tag = 'input window, operand 0']
    #allocation3 [shape = 's32[2]{0}', space=sflag, size = 0x8, scoped, tag = 'scoped memory for tpu_custom_call.1']
    #allocation4 [shape = 's32[2]{0}', space=sflag, size = 0x8, scoped, tag = 'scoped memory for tpu_custom_call.1']
    #allocation5 [shape = 'u8[16384]{0}', space=vmem, size = 0x4000, scoped, tag = 'input window, operand 1, single buffered']
    #allocation6 [shape = 's32[1]{0}', space=sflag, size = 0x4, scoped, tag = 'scoped memory for tpu_custom_call.1']
    #allocation7 [shape = 'u8[16384]{0}', space=vmem, size = 0x4000, scoped, tag = 'input window, operand 2, single buffered']
    #allocation8 [shape = 'u8[8192]{0}', space=vmem, size = 0x2000, scoped, tag = 'output window, operand 0']
    %9 = vsyncpa [#allocation3], 0
    %s10 = scalar_lea.sflag [#allocation3], 1
    %11 = vsyncpa %s10, 0
    %12 = vsyncpa [#allocation6], 0
    %13 = vsyncpa [#allocation4], 0
    %s14 = scalar_lea.sflag [#allocation4], 1
    %15 = vsyncpa %s14, 0
    loop: start=0, step=1, limit=4
    $region2: #{tpu_custom_call.1} parent=1 // loop_pre_header
      _
    $region3: #{tpu_custom_call.1} parent=1 // loop_header
      %s17 = sphi 0, %s21
      %p18 = scmp.ge.s32.totalorder %s17, 4
      %s27 = sphi 0, %s29
      %s30 = sphi 0, %s27
      %s31 = sphi 0, %s30
      %s47 = sphi 0, %s31
      %s51 = sphi 0, %s51
      %s53 = sphi 0, %s51
      %s54 = sphi 0, %s53
      %s68 = sphi 0, %s54
      %s72 = sphi 0, %s72
      %s74 = sphi 0, %s72
      %s75 = sphi 0, %s74
      %s89 = sphi 0, %s75
      %s93 = sphi 0, %s93
      %s95 = sphi 0, %s93
      %s96 = sphi 0, %s95
      %s110 = sphi 0, %s96
      %s116 = sphi 0, %s118
      %s119 = sphi 0, %s116
      %s120 = sphi 0, %s119
      %s136 = sphi 0, %s120
    $region4: #{tpu_custom_call.1} parent=1 // loop_header_branch
      %20 = sbr.rel (%p18) target = $region8
    $region5: #{tpu_custom_call.1} parent=1 // loop_body
      %s22 = ssub.s32 %s17, 1
      %s23 = ssub.s32 %s17, 2
      %s24 = sadd.s32 %s17, 1
      %s25 = ssub.s32 %s17, %s24
      %p26 = scmp.eq.s32.totalorder %s25, 0
      %s28 = sadd.s32 %s27, 1
      %s29 = scalar_select %p26, %s27, %s28
      %p32 = pneg %p26
      %p33 = scmp.eq.s32.totalorder %s17, 1
      %p34 = por %p32, %p33
      %p35 = scmp.ne.s32.totalorder %s27, %s30
      %p36 = scmp.eq.s32.totalorder %s17, 0
      %p37 = por %p35, %p36
      %p38 = scmp.ne.s32.totalorder %s27, %s30
      %p39 = scmp.eq.s32.totalorder %s22, 1
      %p40 = por %p38, %p39
      %p41 = scmp.ne.s32.totalorder %s30, %s31
      %p42 = scmp.eq.s32.totalorder %s22, 0
      %p43 = por %p41, %p42
      %p44 = scmp.ne.s32.totalorder %s30, %s31
      %p45 = scmp.eq.s32.totalorder %s23, 1
      %p46 = por %p44, %p45
      %p48 = scmp.ne.s32.totalorder %s31, %s47
      %p49 = scmp.eq.s32.totalorder %s23, 0
      %p50 = por %p48, %p49
      %s52 = sadd.s32 %s51, 1
      %p55 = scmp.eq.s32.totalorder %s17, 1
      %p56 = scmp.ne.s32.totalorder %s51, %s53
      %p57 = scmp.eq.s32.totalorder %s17, 0
      %p58 = por %p56, %p57
      %p59 = scmp.ne.s32.totalorder %s51, %s53
      %p60 = scmp.eq.s32.totalorder %s22, 1
      %p61 = por %p59, %p60
      %p62 = scmp.ne.s32.totalorder %s53, %s54
      %p63 = scmp.eq.s32.totalorder %s22, 0
      %p64 = por %p62, %p63
      %p65 = scmp.ne.s32.totalorder %s53, %s54
      %p66 = scmp.eq.s32.totalorder %s23, 1
      %p67 = por %p65, %p66
      %p69 = scmp.ne.s32.totalorder %s54, %s68
      %p70 = scmp.eq.s32.totalorder %s23, 0
      %p71 = por %p69, %p70
      %s73 = sadd.s32 %s72, 1
      %p76 = scmp.eq.s32.totalorder %s17, 1
      %p77 = scmp.ne.s32.totalorder %s72, %s74
      %p78 = scmp.eq.s32.totalorder %s17, 0
      %p79 = por %p77, %p78
      %p80 = scmp.ne.s32.totalorder %s72, %s74
      %p81 = scmp.eq.s32.totalorder %s22, 1
      %p82 = por %p80, %p81
      %p83 = scmp.ne.s32.totalorder %s74, %s75
      %p84 = scmp.eq.s32.totalorder %s22, 0
      %p85 = por %p83, %p84
      %p86 = scmp.ne.s32.totalorder %s74, %s75
      %p87 = scmp.eq.s32.totalorder %s23, 1
      %p88 = por %p86, %p87
      %p90 = scmp.ne.s32.totalorder %s75, %s89
      %p91 = scmp.eq.s32.totalorder %s23, 0
      %p92 = por %p90, %p91
      %s94 = sadd.s32 %s93, 1
      %p97 = scmp.eq.s32.totalorder %s17, 1
      %p98 = scmp.ne.s32.totalorder %s93, %s95
      %p99 = scmp.eq.s32.totalorder %s17, 0
      %p100 = por %p98, %p99
      %p101 = scmp.ne.s32.totalorder %s93, %s95
      %p102 = scmp.eq.s32.totalorder %s22, 1
      %p103 = por %p101, %p102
      %p104 = scmp.ne.s32.totalorder %s95, %s96
      %p105 = scmp.eq.s32.totalorder %s22, 0
      %p106 = por %p104, %p105
      %p107 = scmp.ne.s32.totalorder %s95, %s96
      %p108 = scmp.eq.s32.totalorder %s23, 1
      %p109 = por %p107, %p108
      %p111 = scmp.ne.s32.totalorder %s96, %s110
      %p112 = scmp.eq.s32.totalorder %s23, 0
      %p113 = por %p111, %p112
      %s114 = ssub.s32 %s17, %s24
      %p115 = scmp.eq.s32.totalorder %s114, 0
      %s117 = sadd.s32 %s116, 1
      %s118 = scalar_select %p115, %s116, %s117
      %p121 = pneg %p115
      %p122 = scmp.eq.s32.totalorder %s17, 1
      %p123 = por %p121, %p122
      %p124 = scmp.ne.s32.totalorder %s116, %s119
      %p125 = scmp.eq.s32.totalorder %s17, 0
      %p126 = por %p124, %p125
      %p127 = scmp.ne.s32.totalorder %s116, %s119
      %p128 = scmp.eq.s32.totalorder %s22, 1
      %p129 = por %p127, %p128
      %p130 = scmp.ne.s32.totalorder %s119, %s120
      %p131 = scmp.eq.s32.totalorder %s22, 0
      %p132 = por %p130, %p131
      %p133 = scmp.ne.s32.totalorder %s119, %s120
      %p134 = scmp.eq.s32.totalorder %s23, 1
      %p135 = por %p133, %p134
      %p137 = scmp.ne.s32.totalorder %s120, %s136
      %p138 = scmp.eq.s32.totalorder %s23, 0
      %p139 = por %p137, %p138
      %p140 = scmp.le.s32.totalorder 1, %s17
      %p141 = scmp.lt.s32.totalorder %s17, 3
      %p142 = pnand %p140, %p141
      %p143 = pneg %p142
      // Predicated region
      $region9: #{tpu_custom_call.1} parent=5 // pred_check
        _
      $region10: #{tpu_custom_call.1} parent=5 // pred_check_branch
        %145 = sbr.rel (%p142) target = $region12
      $region11: #{tpu_custom_call.1} parent=5 // pred_region
        %s146 = ssub.s32 %s17, 1
        // Predicated region
        $region13: #{tpu_custom_call.1} parent=11 // pred_check
          %p147 = pneg %p64
        $region14: #{tpu_custom_call.1} parent=11 // pred_check_branch
          %149 = sbr.rel (%p147) target = $region16
        $region15: #{tpu_custom_call.1} parent=11 // pred_region
          %151 = vsyncadd [#allocation6], 0
          %s152 = sshll.u32 %s1, 4
          %s153 = int_to_ptr.hbm [resolvable:$true] %s152
          %s154 = sshll.u32 [#allocation5], 4
          %s155 = int_to_ptr.vmem [resolvable:$true] %s154
          %160 = dma.hbm_to_vmem [thread:$0]  %s153, 512, %s155, [#allocation6], 128, 128, 8
        $region16: #{tpu_custom_call.1} parent=11 // pred_fallthru
          _
        // Predicated region
        $region17: #{tpu_custom_call.1} parent=11 // pred_check
          %p161 = pneg %p85
        $region18: #{tpu_custom_call.1} parent=11 // pred_check_branch
          %163 = sbr.rel (%p161) target = $region20
        $region19: #{tpu_custom_call.1} parent=11 // pred_region
          %165 = vsyncadd [#allocation6], 0
          %s166 = sshll.u32 %s2, 4
          %s167 = int_to_ptr.hbm [resolvable:$true] %s166
          %s168 = sshll.u32 [#allocation7], 4
          %s169 = int_to_ptr.vmem [resolvable:$true] %s168
          %174 = dma.hbm_to_vmem [thread:$0]  %s167, 512, %s169, [#allocation6], 64, 64, 4
        $region20: #{tpu_custom_call.1} parent=11 // pred_fallthru
          _
        // Predicated region
        $region21: #{tpu_custom_call.1} parent=11 // pred_check
          %p175 = pneg %p106
        $region22: #{tpu_custom_call.1} parent=11 // pred_check_branch
          %177 = sbr.rel (%p175) target = $region24
        $region23: #{tpu_custom_call.1} parent=11 // pred_region
          _
        $region24: #{tpu_custom_call.1} parent=11 // pred_fallthru
          _
      $region12: #{tpu_custom_call.1} parent=5 // pred_fallthru
        _
      %p178 = scmp.lt.s32.totalorder %s17, 2
      // Predicated region
      $region25: #{tpu_custom_call.1} parent=5 // pred_check
        %p179 = pneg %p178
      $region26: #{tpu_custom_call.1} parent=5 // pred_check_branch
        %181 = sbr.rel (%p179) target = $region28
      $region27: #{tpu_custom_call.1} parent=5 // pred_region
        // Predicated region
        $region29: #{tpu_custom_call.1} parent=27 // pred_check
          %p182 = pneg %p37
        $region30: #{tpu_custom_call.1} parent=27 // pred_check_branch
          %184 = sbr.rel (%p182) target = $region32
        $region31: #{tpu_custom_call.1} parent=27 // pred_region
          %s185 = sand.u32 %s27, 1
          %s186 = scalar_lea.sflag [#allocation3], %s185
          %s187 = sand.u32 %s27, 1
          %s188 = smul.addr %s187, 8
          %s189 = scalar_lea.vmem [#allocation2], %s188
          %191 = vsyncadd %s186, 0
          %s192 = smul.addr %s17, 8
          %s193 = scalar_lea.hbm %s0, %s192
          %s195 = sshll.u32 %s193, 4
          %s196 = int_to_ptr.hbm [resolvable:$true] %s195
          %s197 = sshll.u32 %s189, 4
          %s198 = int_to_ptr.vmem [resolvable:$true] %s197
          %200 = dma.hbm_to_vmem [thread:$0]  %s196, 128, %s198, %s186
        $region32: #{tpu_custom_call.1} parent=27 // pred_fallthru
          _
      $region28: #{tpu_custom_call.1} parent=5 // pred_fallthru
        _
      %p201 = scmp.le.s32.totalorder 1, %s17
      %p202 = scmp.lt.s32.totalorder %s17, 3
      %p203 = pnand %p201, %p202
      %p204 = pneg %p203
      // Predicated region
      $region33: #{tpu_custom_call.1} parent=5 // pred_check
        _
      $region34: #{tpu_custom_call.1} parent=5 // pred_check_branch
        %206 = sbr.rel (%p203) target = $region36
      $region35: #{tpu_custom_call.1} parent=5 // pred_region
        %s207 = ssub.s32 %s17, 1
        %s208 = sand.u32 %s30, 1
        %s209 = scalar_lea.sflag [#allocation3], %s208
        %s210 = sand.u32 %s30, 1
        %s211 = smul.addr %s210, 8
        %s212 = scalar_lea.vmem [#allocation2], %s211
        // Predicated region
        $region37: #{tpu_custom_call.1} parent=35 // pred_check
          %p213 = pneg %p43
        $region38: #{tpu_custom_call.1} parent=35 // pred_check_branch
          %215 = sbr.rel (%p213) target = $region40
        $region39: #{tpu_custom_call.1} parent=35 // pred_region
          %217 = dma.done %s209, 128
        $region40: #{tpu_custom_call.1} parent=35 // pred_fallthru
          _
        // Predicated region
        $region41: #{tpu_custom_call.1} parent=35 // pred_check
          %p218 = pneg %p64
        $region42: #{tpu_custom_call.1} parent=35 // pred_check_branch
          %220 = sbr.rel (%p218) target = $region44
        $region43: #{tpu_custom_call.1} parent=35 // pred_region
          %222 = dma.done [#allocation6], 512
        $region44: #{tpu_custom_call.1} parent=35 // pred_fallthru
          _
        // Predicated region
        $region45: #{tpu_custom_call.1} parent=35 // pred_check
          %p223 = pneg %p85
        $region46: #{tpu_custom_call.1} parent=35 // pred_check_branch
          %225 = sbr.rel (%p223) target = $region48
        $region47: #{tpu_custom_call.1} parent=35 // pred_region
          %227 = dma.done [#allocation6], 512
        $region48: #{tpu_custom_call.1} parent=35 // pred_fallthru
          _
        %s228 = sand.u32 %s30, 1
        %s229 = scalar_lea.sflag [#allocation3], %s228
        %s230 = sand.u32 %s30, 1
        %s231 = smul.addr %s230, 8
        %s232 = scalar_lea.vmem [#allocation2], %s231
        %p233 = pneg %p43
        %p234 = pneg %p40
        %p235 = pneg %p64
        %p236 = pneg %p61
        %p237 = pneg %p85
        %p238 = pneg %p82
        %p239 = pneg %p106
        %p240 = pneg %p103
        %p241 = pneg %p132
        %p242 = pneg %p129
        %s243 = sand.u32 %s119, 1
        %s244 = scalar_lea.sflag [#allocation4], %s243
        %s245 = sand.u32 %s119, 1
        %s246 = smul.addr %s245, 8
        %s247 = scalar_lea.vmem [#allocation8], %s246
        %v249 = vld [vmem:[%s212] sm:$0xff]
        %v250 = vpack.c.bf16 %v249, %v249
        %v251 = vld [vmem:[#allocation5] sm:$0xff]
        %v252 = vld [vmem:[#allocation5 + $0x8] sm:$0xff]
        %v253 = vld [vmem:[#allocation5 + $0x10] sm:$0xff]
        %v254 = vld [vmem:[#allocation5 + $0x18] sm:$0xff]
        %v259 = vunpack.c.l.b16 %v251
        %v260 = vunpack.c.h.b16 %v251
        %v261 = vunpack.c.l.b16 %v252
        %v262 = vunpack.c.h.b16 %v252
        %v263 = vunpack.c.l.b16 %v253
        %v264 = vunpack.c.h.b16 %v253
        %v265 = vunpack.c.l.b16 %v254
        %v266 = vunpack.c.h.b16 %v254
        %v267 = vpack.c.b16 %v261, %v259
        %v268 = vpack.c.b16 %v262, %v260
        %v269 = vpack.c.b16 %v265, %v263
        %v270 = vpack.c.b16 %v266, %v264
        %vm275 = vcmask 261120
        %v277 = vsel %vm275, %v250, 0
        %279 = vmatpush.bf16.msra.mxu0 0
        %280 = vmatpush.bf16.msra.mxu0 0
        %281 = vmatpush.bf16.msra.mxu0 0
        %282 = vmatpush.bf16.msra.mxu0 0
        %283 = vmatpush.bf16.msra.mxu0 0
        %284 = vmatpush.bf16.msra.mxu0 0
        %285 = vmatpush.bf16.msra.mxu0 %v269
        %286 = vmatpush.bf16.msra.mxu0 %v267
        %287 = vmatmul.bf16.gmra.mxu0 %v277
        %v288 = vpop.f32.mrf.mxu0
        %v289 = vadd.f32 0.0, %v288
        %v290 = vpop.f32.mrf.mxu0
        %291 = vdwg.mxu0
        %292 = vmatpush.bf16.msra.mxu0 0
        %293 = vmatpush.bf16.msra.mxu0 0
        %294 = vmatpush.bf16.msra.mxu0 0
        %295 = vmatpush.bf16.msra.mxu0 0
        %296 = vmatpush.bf16.msra.mxu0 0
        %297 = vmatpush.bf16.msra.mxu0 0
        %298 = vmatpush.bf16.msra.mxu0 %v270
        %299 = vmatpush.bf16.msra.mxu0 %v268
        %300 = vmatmul.bf16.gmra.mxu0 %v277
        %v301 = vpop.f32.mrf.mxu0
        %v302 = vadd.f32 0.0, %v301
        %v303 = vpop.f32.mrf.mxu0
        %304 = vdwg.mxu0
        %v305 = vld [vmem:[#allocation7] sm:$0xf]
        %v306 = vld [vmem:[#allocation7 + $0x4] sm:$0xf]
        %v307 = vld [vmem:[#allocation7 + $0x8] sm:$0xf]
        %v308 = vld [vmem:[#allocation7 + $0xc] sm:$0xf]
        %v309 = vld [vmem:[#allocation7 + $0x10] sm:$0xf]
        %v310 = vld [vmem:[#allocation7 + $0x14] sm:$0xf]
        %v311 = vld [vmem:[#allocation7 + $0x18] sm:$0xf]
        %v312 = vld [vmem:[#allocation7 + $0x1c] sm:$0xf]
        %v313 = vpack.c.bf16 %v289, %v289
        %v314 = vpack.c.bf16 %v302, %v302
        %316 = vrot.lane.b32.xlu0 %v313, 64
        %v317 = vpop.permute.xlu0 %316
        %vm318 = vcmask 130048
        %v320 = vsel %vm318, %v313, 0
        %v323 = vsel %vm318, %v317, 0
        %325 = vmatpush.bf16.xpose.msra.mxu0 0
        %326 = vmatpush.bf16.xpose.msra.mxu0 0
        %327 = vmatpush.bf16.xpose.msra.mxu0 0
        %328 = vmatpush.bf16.xpose.msra.mxu0 0
        %329 = vmatpush.bf16.xpose.msra.mxu0 0
        %330 = vmatpush.bf16.xpose.msra.mxu0 0
        %331 = vmatpush.bf16.xpose.msra.mxu0 0
        %332 = vmatpush.bf16.xpose.msra.mxu0 %v323
        %333 = vmatmul.bf16.gmra.mxu0 %v320
        %v334 = vpop.f32.mrf.mxu0
        %v335 = vadd.f32 0.0, %v334
        %v336 = vpop.f32.mrf.mxu0
        %337 = vdwg.mxu0
        %vm338 = vcmask 64512
        %v339 = vsel %vm338, %v335, -inf
        %340 = vmax.xlane.f32.xlu0 %v339
        %v341 = vpop.xlane.xlu0 %340
        %v342 = vsub.f32 %v335, %v341
        %v343 = vmul.f32 %v342, 1.442695
        %v344 = vpow.pop %v343
        %v345 = vsel %vm338, %v344, 0.0
        %346 = vadd.xlane.f32.xlu0 %v345
        %v347 = vpop.xlane.xlu0 %346
        %v348 = vrcp.pop %v347
        %v349 = vmul.f32 %v344, %v348
        %v350 = vpack.c.bf16 %v349, %v349
        %v352 = vsel %vm338, %v350, 0
        %vm354 = vcmask 1043456
        %v356 = vsel %vm354, %v314, 0
        %358 = vmatpush.bf16.msra.mxu0 0
        %359 = vmatpush.bf16.msra.mxu0 0
        %360 = vmatpush.bf16.msra.mxu0 0
        %361 = vmatpush.bf16.msra.mxu0 0
        %362 = vmatpush.bf16.msra.mxu0 0
        %363 = vmatpush.bf16.msra.mxu0 0
        %364 = vmatpush.bf16.msra.mxu0 0
        %365 = vmatpush.bf16.msra.mxu0 %v356
        %366 = vmatmul.bf16.gmra.mxu0 %v352
        %v367 = vpop.f32.mrf.mxu0
        %v368 = vadd.f32 0.0, %v367
        %v369 = vpop.f32.mrf.mxu0
        %370 = vdwg.mxu0
        %v371 = vpack.c.bf16 %v368, %v368
        %372 = vrot.lane.b32.xlu0 %v313, 112
        %v373 = vpop.permute.xlu0 %372
        %374 = vrot.lane.b32.xlu0 %v313, 48
        %v375 = vpop.permute.xlu0 %374
        %v377 = vsel %vm318, %v373, 0
        %v380 = vsel %vm318, %v375, 0
        %382 = vmatpush.bf16.xpose.msra.mxu0 0
        %383 = vmatpush.bf16.xpose.msra.mxu0 0
        %384 = vmatpush.bf16.xpose.msra.mxu0 0
        %385 = vmatpush.bf16.xpose.msra.mxu0 0
        %386 = vmatpush.bf16.xpose.msra.mxu0 0
        %387 = vmatpush.bf16.xpose.msra.mxu0 0
        %388 = vmatpush.bf16.xpose.msra.mxu0 0
        %389 = vmatpush.bf16.xpose.msra.mxu0 %v380
        %390 = vmatmul.bf16.gmra.mxu0 %v377
        %v391 = vpop.f32.mrf.mxu0
        %v392 = vadd.f32 0.0, %v391
        %v393 = vpop.f32.mrf.mxu0
        %394 = vdwg.mxu0
        %v395 = vsel %vm338, %v392, -inf
        %396 = vmax.xlane.f32.xlu0 %v395
        %v397 = vpop.xlane.xlu0 %396
        %v398 = vsub.f32 %v392, %v397
        %v399 = vmul.f32 %v398, 1.442695
        %v400 = vpow.pop %v399
        %v401 = vsel %vm338, %v400, 0.0
        %402 = vadd.xlane.f32.xlu0 %v401
        %v403 = vpop.xlane.xlu0 %402
        %v404 = vrcp.pop %v403
        %v405 = vmul.f32 %v400, %v404
        %v406 = vpack.c.bf16 %v405, %v405
        %408 = vrot.lane.b32.xlu0 %v314, 112
        %v409 = vpop.permute.xlu0 %408
        %v411 = vsel %vm338, %v406, 0
        %v414 = vsel %vm354, %v409, 0
        %416 = vmatpush.bf16.msra.mxu0 0
        %417 = vmatpush.bf16.msra.mxu0 0
        %418 = vmatpush.bf16.msra.mxu0 0
        %419 = vmatpush.bf16.msra.mxu0 0
        %420 = vmatpush.bf16.msra.mxu0 0
        %421 = vmatpush.bf16.msra.mxu0 0
        %422 = vmatpush.bf16.msra.mxu0 0
        %423 = vmatpush.bf16.msra.mxu0 %v414
        %424 = vmatmul.bf16.gmra.mxu0 %v411
        %v425 = vpop.f32.mrf.mxu0
        %v426 = vadd.f32 0.0, %v425
        %v427 = vpop.f32.mrf.mxu0
        %428 = vdwg.mxu0
        %v429 = vpack.c.bf16 %v426, %v426
        %v432 = vunpack.c.l.b16 %v307
        %v433 = vunpack.c.l.b16 %v308
        %v434 = vpack.c.b16 %v433, %v432
        %v437 = vsel %vm318, %v429, 0
        %439 = vmatpush.bf16.msra.mxu0 0
        %440 = vmatpush.bf16.msra.mxu0 0
        %441 = vmatpush.bf16.msra.mxu0 0
        %442 = vmatpush.bf16.msra.mxu0 0
        %443 = vmatpush.bf16.msra.mxu0 0
        %444 = vmatpush.bf16.msra.mxu0 0
        %445 = vmatpush.bf16.msra.mxu0 0
        %446 = vmatpush.bf16.msra.mxu0 %v434
        %447 = vmatmul.bf16.gmra.mxu0 %v437
        %v448 = vpop.f32.mrf.mxu0
        %v449 = vadd.f32 0.0, %v448
        %v450 = vpop.f32.mrf.mxu0
        %451 = vdwg.mxu0
        %v454 = vunpack.c.l.b16 %v305
        %v455 = vunpack.c.l.b16 %v306
        %v456 = vpack.c.b16 %v455, %v454
        %v459 = vsel %vm318, %v371, 0
        %461 = vmatpush.bf16.msra.mxu0 0
        %462 = vmatpush.bf16.msra.mxu0 0
        %463 = vmatpush.bf16.msra.mxu0 0
        %464 = vmatpush.bf16.msra.mxu0 0
        %465 = vmatpush.bf16.msra.mxu0 0
        %466 = vmatpush.bf16.msra.mxu0 0
        %467 = vmatpush.bf16.msra.mxu0 0
        %468 = vmatpush.bf16.msra.mxu0 %v456
        %469 = vmatmul.bf16.gmra.mxu0 %v459
        %v470 = vpop.f32.mrf.mxu0
        %v471 = vadd.f32 %v449, %v470
        %v472 = vpop.f32.mrf.mxu0
        %473 = vdwg.mxu0
        %474 = vrot.lane.b32.xlu0 %v313, 96
        %v475 = vpop.permute.xlu0 %474
        %476 = vrot.lane.b32.xlu0 %v313, 32
        %v477 = vpop.permute.xlu0 %476
        %v479 = vsel %vm318, %v475, 0
        %v482 = vsel %vm318, %v477, 0
        %484 = vmatpush.bf16.xpose.msra.mxu0 0
        %485 = vmatpush.bf16.xpose.msra.mxu0 0
        %486 = vmatpush.bf16.xpose.msra.mxu0 0
        %487 = vmatpush.bf16.xpose.msra.mxu0 0
        %488 = vmatpush.bf16.xpose.msra.mxu0 0
        %489 = vmatpush.bf16.xpose.msra.mxu0 0
        %490 = vmatpush.bf16.xpose.msra.mxu0 0
        %491 = vmatpush.bf16.xpose.msra.mxu0 %v482
        %492 = vmatmul.bf16.gmra.mxu0 %v479
        %v493 = vpop.f32.mrf.mxu0
        %v494 = vadd.f32 0.0, %v493
        %v495 = vpop.f32.mrf.mxu0
        %496 = vdwg.mxu0
        %v497 = vsel %vm338, %v494, -inf
        %498 = vmax.xlane.f32.xlu0 %v497
        %v499 = vpop.xlane.xlu0 %498
        %v500 = vsub.f32 %v494, %v499
        %v501 = vmul.f32 %v500, 1.442695
        %v502 = vpow.pop %v501
        %v503 = vsel %vm338, %v502, 0.0
        %504 = vadd.xlane.f32.xlu0 %v503
        %v505 = vpop.xlane.xlu0 %504
        %v506 = vrcp.pop %v505
        %v507 = vmul.f32 %v502, %v506
        %v508 = vpack.c.bf16 %v507, %v507
        %509 = vrot.lane.b32.xlu0 %v314, 96
        %v510 = vpop.permute.xlu0 %509
        %v512 = vsel %vm338, %v508, 0
        %v515 = vsel %vm354, %v510, 0
        %517 = vmatpush.bf16.msra.mxu0 0
        %518 = vmatpush.bf16.msra.mxu0 0
        %519 = vmatpush.bf16.msra.mxu0 0
        %520 = vmatpush.bf16.msra.mxu0 0
        %521 = vmatpush.bf16.msra.mxu0 0
        %522 = vmatpush.bf16.msra.mxu0 0
        %523 = vmatpush.bf16.msra.mxu0 0
        %524 = vmatpush.bf16.msra.mxu0 %v515
        %525 = vmatmul.bf16.gmra.mxu0 %v512
        %v526 = vpop.f32.mrf.mxu0
        %v527 = vadd.f32 0.0, %v526
        %v528 = vpop.f32.mrf.mxu0
        %529 = vdwg.mxu0
        %v530 = vpack.c.bf16 %v527, %v527
        %v533 = vunpack.c.l.b16 %v309
        %v534 = vunpack.c.l.b16 %v310
        %v535 = vpack.c.b16 %v534, %v533
        %v538 = vsel %vm318, %v530, 0
        %540 = vmatpush.bf16.msra.mxu0 0
        %541 = vmatpush.bf16.msra.mxu0 0
        %542 = vmatpush.bf16.msra.mxu0 0
        %543 = vmatpush.bf16.msra.mxu0 0
        %544 = vmatpush.bf16.msra.mxu0 0
        %545 = vmatpush.bf16.msra.mxu0 0
        %546 = vmatpush.bf16.msra.mxu0 0
        %547 = vmatpush.bf16.msra.mxu0 %v535
        %548 = vmatmul.bf16.gmra.mxu0 %v538
        %v549 = vpop.f32.mrf.mxu0
        %v550 = vadd.f32 0.0, %v549
        %v551 = vpop.f32.mrf.mxu0
        %552 = vdwg.mxu0
        %v553 = vadd.f32 %v471, %v550
        %554 = vrot.lane.b32.xlu0 %v313, 80
        %v555 = vpop.permute.xlu0 %554
        %556 = vrot.lane.b32.xlu0 %v313, 16
        %v557 = vpop.permute.xlu0 %556
        %v559 = vsel %vm318, %v555, 0
        %v562 = vsel %vm318, %v557, 0
        %564 = vmatpush.bf16.xpose.msra.mxu0 0
        %565 = vmatpush.bf16.xpose.msra.mxu0 0
        %566 = vmatpush.bf16.xpose.msra.mxu0 0
        %567 = vmatpush.bf16.xpose.msra.mxu0 0
        %568 = vmatpush.bf16.xpose.msra.mxu0 0
        %569 = vmatpush.bf16.xpose.msra.mxu0 0
        %570 = vmatpush.bf16.xpose.msra.mxu0 0
        %571 = vmatpush.bf16.xpose.msra.mxu0 %v562
        %572 = vmatmul.bf16.gmra.mxu0 %v559
        %v573 = vpop.f32.mrf.mxu0
        %v574 = vadd.f32 0.0, %v573
        %v575 = vpop.f32.mrf.mxu0
        %576 = vdwg.mxu0
        %v577 = vsel %vm338, %v574, -inf
        %578 = vmax.xlane.f32.xlu0 %v577
        %v579 = vpop.xlane.xlu0 %578
        %v580 = vsub.f32 %v574, %v579
        %v581 = vmul.f32 %v580, 1.442695
        %v582 = vpow.pop %v581
        %v583 = vsel %vm338, %v582, 0.0
        %584 = vadd.xlane.f32.xlu0 %v583
        %v585 = vpop.xlane.xlu0 %584
        %v586 = vrcp.pop %v585
        %v587 = vmul.f32 %v582, %v586
        %v588 = vpack.c.bf16 %v587, %v587
        %589 = vrot.lane.b32.xlu0 %v314, 80
        %v590 = vpop.permute.xlu0 %589
        %v592 = vsel %vm338, %v588, 0
        %v595 = vsel %vm354, %v590, 0
        %597 = vmatpush.bf16.msra.mxu0 0
        %598 = vmatpush.bf16.msra.mxu0 0
        %599 = vmatpush.bf16.msra.mxu0 0
        %600 = vmatpush.bf16.msra.mxu0 0
        %601 = vmatpush.bf16.msra.mxu0 0
        %602 = vmatpush.bf16.msra.mxu0 0
        %603 = vmatpush.bf16.msra.mxu0 0
        %604 = vmatpush.bf16.msra.mxu0 %v595
        %605 = vmatmul.bf16.gmra.mxu0 %v592
        %v606 = vpop.f32.mrf.mxu0
        %v607 = vadd.f32 0.0, %v606
        %v608 = vpop.f32.mrf.mxu0
        %609 = vdwg.mxu0
        %v610 = vpack.c.bf16 %v607, %v607
        %v613 = vunpack.c.l.b16 %v311
        %v614 = vunpack.c.l.b16 %v312
        %v615 = vpack.c.b16 %v614, %v613
        %v618 = vsel %vm318, %v610, 0
        %620 = vmatpush.bf16.msra.mxu0 0
        %621 = vmatpush.bf16.msra.mxu0 0
        %622 = vmatpush.bf16.msra.mxu0 0
        %623 = vmatpush.bf16.msra.mxu0 0
        %624 = vmatpush.bf16.msra.mxu0 0
        %625 = vmatpush.bf16.msra.mxu0 0
        %626 = vmatpush.bf16.msra.mxu0 0
        %627 = vmatpush.bf16.msra.mxu0 %v615
        %628 = vmatmul.bf16.gmra.mxu0 %v618
        %v629 = vpop.f32.mrf.mxu0
        %v630 = vadd.f32 0.0, %v629
        %v631 = vpop.f32.mrf.mxu0
        %632 = vdwg.mxu0
        %v633 = vadd.f32 %v553, %v630
        %v634 = vsel %vm275, %v633, 0.0
        %635 = vadd.xlane.f32.xlu0 %v634
        %v636 = vpop.xlane.xlu0 %635
        %v637 = vrcp.pop 32.0
        %v638 = vmul.f32 32.0, %v637
        %v639 = vsub.f32 1.0, %v638
        %v640 = vmul.f32 %v637, %v639
        %v641 = vadd.f32 %v637, %v640
        %vm642 = vweird.f32 %v637
        %v643 = vsel %vm642, %v637, %v641
        %v644 = vmul.f32 %v636, %v643
        %v645 = vsub.f32 %v633, %v644
        %v646 = vmul.f32 %v645, %v645
        %v647 = vsel %vm275, %v646, 0.0
        %648 = vadd.xlane.f32.xlu0 %v647
        %v649 = vpop.xlane.xlu0 %648
        %v650 = vmul.f32 %v649, %v643
        %v651 = vadd.f32 %v650, 1e-05
        %v652 = vrsqrt.pop %v651
        %v653 = vmul.f32 %v652, %v651
        %v654 = vmul.f32 %v653, %v652
        %v655 = vmul.f32 0.5, %v654
        %v656 = vsub.f32 1.5, %v655
        %v657 = vmul.f32 %v652, %v656
        %vm658 = vweird.f32 %v651
        %vm659 = vweird.f32 %v652
        %vm660 = vmor %vm658, %vm659
        %v661 = vsel %vm660, %v652, %v657
        %v662 = vmul.f32 %v645, %v661
        %v663 = vld [vmem:[%s3] sm:$0x1]
        %v665 = vperm.slane %v663, 0
        %v667 = vmul.f32 %v662, %v665
        %668 = vst.msk [vmem:[%s247] sm:$0xff] %vm275, %v667
        %s669 = sand.u32 %s119, 1
        %s670 = scalar_lea.sflag [#allocation4], %s669
        %s671 = sand.u32 %s119, 1
        %s672 = smul.addr %s671, 8
        %s673 = scalar_lea.vmem [#allocation8], %s672
        // Predicated region
        $region49: #{tpu_custom_call.1} parent=35 // pred_check
          %p674 = pneg %p129
        $region50: #{tpu_custom_call.1} parent=35 // pred_check_branch
          %676 = sbr.rel (%p674) target = $region52
        $region51: #{tpu_custom_call.1} parent=35 // pred_region
          %678 = vsyncadd %s670, 0
          %s679 = smul.addr %s22, 8
          %s680 = scalar_lea.hbm %s4, %s679
          %s682 = sshll.u32 %s673, 4
          %s683 = int_to_ptr.vmem [resolvable:$true] %s682
          %s684 = sshll.u32 %s680, 4
          %s685 = int_to_ptr.hbm [resolvable:$true] %s684
          %687 = dma.vmem_to_hbm [thread:$0]  %s683, 128, %s685, %s670
        $region52: #{tpu_custom_call.1} parent=35 // pred_fallthru
          _
      $region36: #{tpu_custom_call.1} parent=5 // pred_fallthru
        _
      %p688 = scmp.le.s32.totalorder 2, %s17
      // Predicated region
      $region53: #{tpu_custom_call.1} parent=5 // pred_check
        %p689 = pneg %p688
      $region54: #{tpu_custom_call.1} parent=5 // pred_check_branch
        %691 = sbr.rel (%p689) target = $region56
      $region55: #{tpu_custom_call.1} parent=5 // pred_region
        %s692 = ssub.s32 %s17, 2
        // Predicated region
        $region57: #{tpu_custom_call.1} parent=55 // pred_check
          %p693 = pneg %p135
        $region58: #{tpu_custom_call.1} parent=55 // pred_check_branch
          %695 = sbr.rel (%p693) target = $region60
        $region59: #{tpu_custom_call.1} parent=55 // pred_region
          %s696 = sand.u32 %s120, 1
          %s697 = scalar_lea.sflag [#allocation4], %s696
          %s698 = sand.u32 %s120, 1
          %s699 = smul.addr %s698, 8
          %s700 = scalar_lea.vmem [#allocation8], %s699
          %702 = dma.done %s697, 128
        $region60: #{tpu_custom_call.1} parent=55 // pred_fallthru
          _
      $region56: #{tpu_custom_call.1} parent=5 // pred_fallthru
        _
    $region6: #{tpu_custom_call.1} parent=1 // loop_footer
      %s21 = sadd.s32 1, %s17
    $region7: #{tpu_custom_call.1} parent=1 // loop_footer_branch
      %16 = sbr.rel target = $region3
    $region8: #{tpu_custom_call.1} parent=1 // loop_exit
      _
    %703 = vsyncpa [#allocation3], 1
    %s704 = scalar_lea.sflag [#allocation3], 1
    %705 = vsyncpa %s704, 1
    %706 = vsyncpa [#allocation6], 1
    %707 = vsyncpa [#allocation4], 1
    %s708 = scalar_lea.sflag [#allocation4], 1
    %709 = vsyncpa %s708, 1

</llo_original>
